<compile_context>
chip_gen: v6e
topology: v6e:2x2x1
jax: 0.10.0
libtpu: 0.0.40
codegen_flags: <defaults>
</compile_context>

<pallas_src>
import functools

import jax
import jax.numpy as jnp
from jax import lax
from jax.experimental import pallas as pl
from jax.experimental.pallas import tpu as pltpu

H_A, H_C = 200, 100           # PyTorch hidden sizes (actor / critic)
H_A_PAD, H_C_PAD = 256, 128   # lane-aligned padded hidden sizes
H1 = H_A_PAD + H_C_PAD        # fused hidden width (384)
OUT_PAD = 128                 # lane-dense packed output width


def _round_up(n, m):
    return ((n + m - 1) // m) * m


# ----------------------------------------------------------------------------
# Kernel (one batch tile per grid step)
# ----------------------------------------------------------------------------
def _net_kernel(x_ref, w1_ref, b1_ref, w2_ref, b2_ref, out_ref, *, a_dim):
    # ---- fused trunk: [a1 | c1] in one MXU pass -----------------------------
    # x arrives f32; cast to the matmul dtype in-kernel (free under the MXU).
    x = x_ref[...].astype(w1_ref.dtype)                        # (TB, s_dim)
    h = jnp.dot(x, w1_ref[...], preferred_element_type=jnp.float32)
    h = jnp.clip(h + b1_ref[...], 0.0, 6.0)                    # relu6, f32 (TB, H1)

    # ---- fused heads: block-diag weight -> [mu_pre | sig_pre | v | pad] -----
    z = jnp.dot(h.astype(w2_ref.dtype), w2_ref[...],
                preferred_element_type=jnp.float32)
    z = z + b2_ref[...]                                        # f32 (TB, OUT_PAD)

    mu = 2.0 * jnp.tanh(z)
    # softplus(z) + 1e-3  (abs form: single exp + single log1p on the EUP)
    sp = jnp.maximum(z, 0.0) + jnp.log1p(jnp.exp(-jnp.abs(z))) + 0.001

    # Single-vreg column selector (a_dim is static); broadcast in the where.
    col = lax.broadcasted_iota(jnp.int32, (1, OUT_PAD), 1)
    out = jnp.where(col < a_dim, mu,
                    jnp.where(col < 2 * a_dim, sp, z))         # value col & pad: identity
    out_ref[...] = out.astype(out_ref.dtype)                   # one unmasked lane-dense store


# ----------------------------------------------------------------------------
# Wrapper
# ----------------------------------------------------------------------------
def net_forward(x, packed, a_dim, *, block_b=512, out_dtype=jnp.float32):
    """x: (B, s_dim) f32. packed: dict from pack_params. Returns (mu, sigma, values).

    block_b: batch tile size (rounded to a sublane multiple). Weights/biases are
    pinned in VMEM via constant index_maps; x/out stream through the batch grid.
    out_dtype: dtype of the packed output slab (bf16 halves writeback at large B).
    """
    B, s_dim = x.shape

    # Batch tile: multiple of 8 (sublane), never larger than needed.
    tb = min(_round_up(block_b, 8), _round_up(B, 8))
    b_pad = _round_up(B, tb)
    if b_pad != B:
        x = jnp.pad(x, ((0, b_pad - B), (0, 0)))
    grid = (b_pad // tb,)

    out = pl.pallas_call(
        functools.partial(_net_kernel, a_dim=a_dim),
        out_shape=jax.ShapeDtypeStruct((b_pad, OUT_PAD), out_dtype),
        grid_spec=pltpu.PrefetchScalarGridSpec(
            num_scalar_prefetch=0,
            grid=grid,
            in_specs=[
                pl.BlockSpec((tb, s_dim), lambda i: (i, 0)),        # x: streams
                pl.BlockSpec((s_dim, H1), lambda i: (0, 0)),        # w1: resident
                pl.BlockSpec((1, H1), lambda i: (0, 0)),            # b1: resident
                pl.BlockSpec((H1, OUT_PAD), lambda i: (0, 0)),      # w2: resident
                pl.BlockSpec((1, OUT_PAD), lambda i: (0, 0)),       # b2: resident
            ],
            out_specs=pl.BlockSpec((tb, OUT_PAD), lambda i: (i, 0)),
        ),
        compiler_params=pltpu.CompilerParams(
            dimension_semantics=("parallel",),   # shards batch across v7x's 2 TCs
        ),
    )(x, packed["w1"], packed["b1"], packed["w2"], packed["b2"])

    out = out[:B].astype(jnp.float32)
    mu = out[:, :a_dim]
    sigma = out[:, a_dim:2 * a_dim]
    values = out[:, 2 * a_dim:2 * a_dim + 1]
    return mu, sigma, values


# ----------------------------------------------------------------------------
# Parameter construction (host-side)
# ----------------------------------------------------------------------------
def init_params(key, s_dim, a_dim):
    """Synthetic init mimicking set_init: N(0, 0.1) weights, zero biases.
    Weights stored as (in_features, out_features) so y = x @ W + b."""
    ks = jax.random.split(key, 5)

    def lin(k, fi, fo):
        w = 0.1 * jax.random.normal(k, (fi, fo), dtype=jnp.float32)
        b = jnp.zeros((fo,), dtype=jnp.float32)
        return w, b

    w_a1, b_a1 = lin(ks[0], s_dim, H_A)
    w_mu, b_mu = lin(ks[1], H_A, a_dim)
    w_sig, b_sig = lin(ks[2], H_A, a_dim)
    w_c1, b_c1 = lin(ks[3], s_dim, H_C)
    w_v, b_v = lin(ks[4], H_C, 1)

    return dict(w_a1=w_a1, b_a1=b_a1, w_mu=w_mu, b_mu=b_mu,
                w_sig=w_sig, b_sig=b_sig, w_c1=w_c1, b_c1=b_c1,
                w_v=w_v, b_v=b_v)


def pack_params(raw, s_dim, a_dim, matmul_dtype=jnp.bfloat16):
    """Fuse + zero-pad the per-layer weights into the two kernel operands.

    matmul_dtype=bf16 is the production path on ALL TPU generations (the MXU is
    bf16-native on v5e/v6e/v7x; f32 matmuls are emulated in multiple passes and
    double the weight DMA). Keep f32 only for exact parity checks."""
    assert 2 * a_dim + 1 <= OUT_PAD, "a_dim too large for packed 128-wide output"

    # Layer 1: [W_a1 | 0 | W_c1 | 0]  -> (s_dim, 384)
    w1 = jnp.zeros((s_dim, H1), jnp.float32)
    w1 = w1.at[:, :H_A].set(raw["w_a1"])
    w1 = w1.at[:, H_A_PAD:H_A_PAD + H_C].set(raw["w_c1"])
    b1 = jnp.zeros((1, H1), jnp.float32)
    b1 = b1.at[0, :H_A].set(raw["b_a1"])
    b1 = b1.at[0, H_A_PAD:H_A_PAD + H_C].set(raw["b_c1"])

    # Layer 2: block-diagonal head weight -> (384, 128)
    #   rows [0, H_A)        x cols [0, a_dim)        = W_mu
    #   rows [0, H_A)        x cols [a_dim, 2 a_dim)  = W_sig
    #   rows [H_A_PAD, +H_C) x col  2*a_dim           = W_v
    w2 = jnp.zeros((H1, OUT_PAD), jnp.float32)
    w2 = w2.at[:H_A, 0:a_dim].set(raw["w_mu"])
    w2 = w2.at[:H_A, a_dim:2 * a_dim].set(raw["w_sig"])
    w2 = w2.at[H_A_PAD:H_A_PAD + H_C, 2 * a_dim:2 * a_dim + 1].set(raw["w_v"])
    b2 = jnp.zeros((1, OUT_PAD), jnp.float32)
    b2 = b2.at[0, 0:a_dim].set(raw["b_mu"])
    b2 = b2.at[0, a_dim:2 * a_dim].set(raw["b_sig"])
    b2 = b2.at[0, 2 * a_dim].set(raw["b_v"][0])

    # Matmul operands in the MXU dtype; biases stay f32 (v5e has no bf16 VPU/EUP).
    return dict(w1=w1.astype(matmul_dtype), b1=b1,
                w2=w2.astype(matmul_dtype), b2=b2)


# ----------------------------------------------------------------------------
# References
# ----------------------------------------------------------------------------
def reference_f32(x, raw):
    """PyTorch-faithful f32 forward."""
    a1 = jnp.clip(x @ raw["w_a1"] + raw["b_a1"], 0.0, 6.0)
    mu = 2.0 * jnp.tanh(a1 @ raw["w_mu"] + raw["b_mu"])
    sigma = jax.nn.softplus(a1 @ raw["w_sig"] + raw["b_sig"]) + 0.001
    c1 = jnp.clip(x @ raw["w_c1"] + raw["b_c1"], 0.0, 6.0)
    values = c1 @ raw["w_v"] + raw["b_v"]
    return mu, sigma, values


def reference_bf16(x, raw):
    """Mirrors the bf16-MXU dataflow (bf16 operands, f32 accumulate/activations)."""
    q = lambda a: a.astype(jnp.bfloat16).astype(jnp.float32)
    xq = q(x)
    a1 = jnp.clip(xq @ q(raw["w_a1"]) + raw["b_a1"], 0.0, 6.0)
    c1 = jnp.clip(xq @ q(raw["w_c1"]) + raw["b_c1"], 0.0, 6.0)
    a1q, c1q = q(a1), q(c1)
    mu = 2.0 * jnp.tanh(a1q @ q(raw["w_mu"]) + raw["b_mu"])
    sigma = jax.nn.softplus(a1q @ q(raw["w_sig"]) + raw["b_sig"]) + 0.001
    values = c1q @ q(raw["w_v"]) + raw["b_v"]
    return mu, sigma, values


# ----------------------------------------------------------------------------
if __name__ == "__main__":
    key = jax.random.PRNGKey(0)
    k_x, k_p = jax.random.split(key)

    B, S_DIM, A_DIM = 8, 16, 4
    x = jax.random.normal(k_x, (B, S_DIM), dtype=jnp.float32)
    raw = init_params(k_p, S_DIM, A_DIM)

    # ---- f32 matmul path: strict check against the PyTorch-faithful reference ----
    packed_f32 = pack_params(raw, S_DIM, A_DIM, matmul_dtype=jnp.float32)
    mu, sigma, values = net_forward(x, packed_f32, A_DIM)
    jax.block_until_ready((mu, sigma, values))
    mu_r, sig_r, val_r = reference_f32(x, raw)
    assert jnp.allclose(mu, mu_r, atol=1e-4), "f32 mu mismatch"
    assert jnp.allclose(sigma, sig_r, atol=1e-4), "f32 sigma mismatch"
    assert jnp.allclose(values, val_r, atol=1e-4), "f32 values mismatch"

    # ---- bf16-MXU production path (all chips): check against the bf16 mirror ----
    packed_bf16 = pack_params(raw, S_DIM, A_DIM)   # default bf16
    mu_b, sigma_b, values_b = net_forward(x, packed_bf16, A_DIM)
    jax.block_until_ready((mu_b, sigma_b, values_b))
    mu_q, sig_q, val_q = reference_bf16(x, raw)
    assert jnp.allclose(mu_b, mu_q, atol=5e-3), "bf16 mu mismatch"
    assert jnp.allclose(sigma_b, sig_q, atol=5e-3), "bf16 sigma mismatch"
    assert jnp.allclose(values_b, val_q, atol=5e-3), "bf16 values mismatch"

    # ---- exercise a non-trivial batch grid (multiple tiles, streamed x/out) ----
    B2 = 48
    x2 = jax.random.normal(jax.random.PRNGKey(1), (B2, S_DIM), dtype=jnp.float32)
    mu2, sig2, val2 = net_forward(x2, packed_bf16, A_DIM, block_b=16)
    jax.block_until_ready((mu2, sig2, val2))
    mu2_q, sig2_q, val2_q = reference_bf16(x2, raw)
    assert jnp.allclose(mu2, mu2_q, atol=5e-3), "gridded mu mismatch"
    assert jnp.allclose(sig2, sig2_q, atol=5e-3), "gridded sigma mismatch"
    assert jnp.allclose(val2, val2_q, atol=5e-3), "gridded values mismatch"

    print("KERNEL_OK")
</pallas_src>

<mosaic_0001>
module attributes {stable_mosaic.version = 11 : i64} {
  func.func @_net_kernel(%arg0: i32, %arg1: memref<8x16xf32, #tpu.memory_space<vmem>>, %arg2: memref<16x384xf32, #tpu.memory_space<vmem>>, %arg3: memref<1x384xf32, #tpu.memory_space<vmem>>, %arg4: memref<384x128xf32, #tpu.memory_space<vmem>>, %arg5: memref<1x128xf32, #tpu.memory_space<vmem>>, %arg6: memref<8x128xf32, #tpu.memory_space<vmem>>) attributes {dimension_semantics = [#tpu.dimension_semantics<parallel>], iteration_bounds = array<i64: 1>, scalar_prefetch = 0 : i64, scratch_operands = 0 : i64, tpu.core_type = #tpu.core_type<tc>, window_params = [{transform_indices = @transform_0, window_bounds = array<i64: 8, 16>}, {pipeline_mode = #tpu.pipeline_mode<synchronous>, transform_indices = @transform_1, window_bounds = array<i64: 16, 384>}, {pipeline_mode = #tpu.pipeline_mode<synchronous>, transform_indices = @transform_2, window_bounds = array<i64: 1, 384>}, {pipeline_mode = #tpu.pipeline_mode<synchronous>, transform_indices = @transform_3, window_bounds = array<i64: 384, 128>}, {pipeline_mode = #tpu.pipeline_mode<synchronous>, transform_indices = @transform_4, window_bounds = array<i64: 1, 128>}, {transform_indices = @transform_5, window_bounds = array<i64: 8, 128>}]} {
    %c0 = arith.constant 0 : index
    %c0_0 = arith.constant 0 : index
    %0 = vector.load %arg1[%c0, %c0_0] : memref<8x16xf32, #tpu.memory_space<vmem>>, vector<8x16xf32>
    %c0_1 = arith.constant 0 : index
    %c0_2 = arith.constant 0 : index
    %1 = vector.load %arg2[%c0_1, %c0_2] : memref<16x384xf32, #tpu.memory_space<vmem>>, vector<16x384xf32>
    %cst = arith.constant dense<0.000000e+00> : vector<8x384xf32>
    %2 = tpu.matmul %0, %1, %cst {dimension_numbers = #tpu.dot_dimension_numbers<[1], [0], [0], [1], [0, 0, 1, 1], [], []>} : vector<8x16xf32>, vector<16x384xf32>, vector<8x384xf32> -> vector<8x384xf32>
    %c0_3 = arith.constant 0 : index
    %c0_4 = arith.constant 0 : index
    %3 = vector.load %arg3[%c0_3, %c0_4] : memref<1x384xf32, #tpu.memory_space<vmem>>, vector<1x384xf32>
    %4 = vector.broadcast %3 : vector<1x384xf32> to vector<8x384xf32>
    %5 = arith.addf %2, %4 : vector<8x384xf32>
    %cst_5 = arith.constant 0.000000e+00 : f32
    %cst_6 = arith.constant 6.000000e+00 : f32
    %6 = vector.broadcast %cst_5 : f32 to vector<8x384xf32>
    %7 = arith.maximumf %6, %5 : vector<8x384xf32>
    %8 = vector.broadcast %cst_6 : f32 to vector<8x384xf32>
    %9 = arith.minimumf %8, %7 : vector<8x384xf32>
    %c0_7 = arith.constant 0 : index
    %c0_8 = arith.constant 0 : index
    %10 = vector.load %arg4[%c0_7, %c0_8] : memref<384x128xf32, #tpu.memory_space<vmem>>, vector<384x128xf32>
    %cst_9 = arith.constant dense<0.000000e+00> : vector<8x128xf32>
    %11 = tpu.matmul %9, %10, %cst_9 {dimension_numbers = #tpu.dot_dimension_numbers<[1], [0], [0], [1], [0, 0, 1, 1], [], []>} : vector<8x384xf32>, vector<384x128xf32>, vector<8x128xf32> -> vector<8x128xf32>
    %c0_10 = arith.constant 0 : index
    %c0_11 = arith.constant 0 : index
    %12 = vector.load %arg5[%c0_10, %c0_11] : memref<1x128xf32, #tpu.memory_space<vmem>>, vector<1x128xf32>
    %13 = vector.broadcast %12 : vector<1x128xf32> to vector<8x128xf32>
    %14 = arith.addf %11, %13 : vector<8x128xf32>
    %15 = math.tanh %14 : vector<8x128xf32>
    %cst_12 = arith.constant 2.000000e+00 : f32
    %16 = vector.broadcast %cst_12 : f32 to vector<8x128xf32>
    %17 = arith.mulf %16, %15 : vector<8x128xf32>
    %cst_13 = arith.constant 0.000000e+00 : f32
    %18 = vector.broadcast %cst_13 : f32 to vector<8x128xf32>
    %19 = arith.maximumf %14, %18 : vector<8x128xf32>
    %20 = math.absf %14 : vector<8x128xf32>
    %cst_14 = arith.constant 0.000000e+00 : f32
    %21 = vector.broadcast %cst_14 : f32 to vector<8x128xf32>
    %22 = arith.subf %21, %20 : vector<8x128xf32>
    %23 = math.exp %22 : vector<8x128xf32>
    %24 = math.log1p %23 : vector<8x128xf32>
    %25 = arith.addf %19, %24 : vector<8x128xf32>
    %cst_15 = arith.constant 1.000000e-03 : f32
    %26 = vector.broadcast %cst_15 : f32 to vector<8x128xf32>
    %27 = arith.addf %25, %26 : vector<8x128xf32>
    %28 = tpu.iota {dimensions = array<i32: 1>} : vector<1x128xi32>
    %c4_i32 = arith.constant 4 : i32
    %29 = vector.broadcast %c4_i32 : i32 to vector<1x128xi32>
    %30 = arith.cmpi slt, %28, %29 : vector<1x128xi32>
    %c8_i32 = arith.constant 8 : i32
    %31 = vector.broadcast %c8_i32 : i32 to vector<1x128xi32>
    %32 = arith.cmpi slt, %28, %31 : vector<1x128xi32>
    %33 = vector.shape_cast %32 : vector<1x128xi1> to vector<1x128xi1>
    %34 = vector.broadcast %33 : vector<1x128xi1> to vector<8x128xi1>
    %35 = arith.select %34, %27, %14 : vector<8x128xi1>, vector<8x128xf32>
    %36 = vector.shape_cast %30 : vector<1x128xi1> to vector<1x128xi1>
    %37 = vector.broadcast %36 : vector<1x128xi1> to vector<8x128xi1>
    %38 = arith.select %37, %17, %35 : vector<8x128xi1>, vector<8x128xf32>
    %c0_16 = arith.constant 0 : index
    %c0_17 = arith.constant 0 : index
    %39 = vector.load %arg6[%c0_16, %c0_17] : memref<8x128xf32, #tpu.memory_space<vmem>>, vector<8x128xf32>
    tpu.vector_store %arg6[%c0_16, %c0_17], %38 {strides = array<i32>} : memref<8x128xf32, #tpu.memory_space<vmem>>, vector<8x128xf32>,
    return
  }
  func.func @transform_0(%arg0: i32) -> (i32, i32) {
    %c0_i32 = arith.constant 0 : i32
    %c0_i32_0 = arith.constant 0 : i32
    return %arg0, %c0_i32 : i32, i32
  }
  func.func @transform_1(%arg0: i32) -> (i32, i32) {
    %c0_i32 = arith.constant 0 : i32
    %c0_i32_0 = arith.constant 0 : i32
    %c0_i32_1 = arith.constant 0 : i32
    return %c0_i32, %c0_i32_0 : i32, i32
  }
  func.func @transform_2(%arg0: i32) -> (i32, i32) {
    %c0_i32 = arith.constant 0 : i32
    %c0_i32_0 = arith.constant 0 : i32
    %c0_i32_1 = arith.constant 0 : i32
    return %c0_i32, %c0_i32_0 : i32, i32
  }
  func.func @transform_3(%arg0: i32) -> (i32, i32) {
    %c0_i32 = arith.constant 0 : i32
    %c0_i32_0 = arith.constant 0 : i32
    %c0_i32_1 = arith.constant 0 : i32
    return %c0_i32, %c0_i32_0 : i32, i32
  }
  func.func @transform_4(%arg0: i32) -> (i32, i32) {
    %c0_i32 = arith.constant 0 : i32
    %c0_i32_0 = arith.constant 0 : i32
    %c0_i32_1 = arith.constant 0 : i32
    return %c0_i32, %c0_i32_0 : i32, i32
  }
  func.func @transform_5(%arg0: i32) -> (i32, i32) {
    %c0_i32 = arith.constant 0 : i32
    %c0_i32_0 = arith.constant 0 : i32
    return %arg0, %c0_i32 : i32, i32
  }
}

</mosaic_0001>

<llo_original>
// kernel: tpu_custom_call.1
$region0: #{tpu_custom_call.1}
  #allocation0 [shape = 'u32[]', space=smem, size = 0x4, offset = 0x4, fixed_abs, tag = 'smem constant byte address 0x4 - core index']
  #allocation1 [shape = 'u32[144,128]{1,0:T(1,128)}', space=vmem, size = 0x12000, scoped, tag = 'internal scratch']
  %s0 = inlined_call_operand.hbm [shape: f32[8,16], index: 0, kind: input, shape index: {}]
  %s1 = inlined_call_operand.hbm [shape: f32[16,384], index: 1, kind: input, shape index: {}]
  %s2 = inlined_call_operand.vmem [shape: f32[1,384], index: 2, kind: input, shape index: {}]
  %s3 = inlined_call_operand.hbm [shape: f32[384,128], index: 3, kind: input, shape index: {}]
  %s4 = inlined_call_operand.vmem [shape: f32[1,128], index: 4, kind: input, shape index: {}]
  %s5 = inlined_call_operand.hbm [shape: f32[8,128], index: 5, kind: output, shape index: {}]
  %s6 = sld [smem:[#allocation0]]
  $region42: #{tpu_custom_call.1} parent=0
    _
  %s8 = ssub.s32 1, %s6
  %s9 = scalar_select 0, %s8, %s6
  $region1: #{tpu_custom_call.1} parent=0
    #allocation2 [shape = 'u8[4096]{0}', space=vmem, size = 0x1000, scoped, tag = 'input window, operand 0, single buffered']
    #allocation3 [shape = 's32[1]{0}', space=sflag, size = 0x4, scoped, tag = 'scoped memory for tpu_custom_call.1']
    #allocation4 [shape = 's32[1]{0}', space=sflag, size = 0x4, scoped, tag = 'scoped memory for tpu_custom_call.1']
    #allocation5 [shape = 'u8[24576]{0}', space=vmem, size = 0x6000, scoped, tag = 'input window, operand 1, single buffered']
    #allocation6 [shape = 's32[1]{0}', space=sflag, size = 0x4, scoped, tag = 'scoped memory for tpu_custom_call.1']
    #allocation7 [shape = 'u8[196608]{0}', space=vmem, size = 0x30000, scoped, tag = 'input window, operand 3, single buffered']
    #allocation8 [shape = 'u8[4096]{0}', space=vmem, size = 0x1000, scoped, tag = 'output window, operand 0, single buffered']
    %10 = vsyncpa [#allocation3], 0
    %11 = vsyncpa [#allocation6], 0
    %12 = vsyncpa [#allocation4], 0
    // Predicated region
    $region2: #{tpu_custom_call.1} parent=1 // pred_check
      _
    $region3: #{tpu_custom_call.1} parent=1 // pred_check_branch
      %14 = sbr.rel (0) target = $region5
    $region4: #{tpu_custom_call.1} parent=1 // pred_region
      %s16 = ssub.s32 128, 128
      %17 = vsyncadd [#allocation3], %s16
      %s19 = sshll.u32 [#allocation2], 4
      %s20 = int_to_ptr.vmem [resolvable:$true] %s19
      %22 = dma.hbm_to_vmem [thread:$0]  %s0, 128, %s20, [#allocation3]
    $region5: #{tpu_custom_call.1} parent=1 // pred_fallthru
      _
    // Predicated region
    $region6: #{tpu_custom_call.1} parent=1 // pred_check
      _
    $region7: #{tpu_custom_call.1} parent=1 // pred_check_branch
      %24 = sbr.rel (0) target = $region9
    $region8: #{tpu_custom_call.1} parent=1 // pred_region
      %s26 = ssub.s32 768, 768
      %27 = vsyncadd [#allocation6], %s26
      %s28 = sshll.u32 [#allocation5], 4
      %s29 = int_to_ptr.vmem [resolvable:$true] %s28
      %34 = dma.hbm_to_vmem [thread:$0]  %s1, 768, %s29, [#allocation6], 384, 384, 24
    $region9: #{tpu_custom_call.1} parent=1 // pred_fallthru
      _
    // Predicated region
    $region10: #{tpu_custom_call.1} parent=1 // pred_check
      _
    $region11: #{tpu_custom_call.1} parent=1 // pred_check_branch
      %36 = sbr.rel (0) target = $region13
    $region12: #{tpu_custom_call.1} parent=1 // pred_region
      _
    $region13: #{tpu_custom_call.1} parent=1 // pred_fallthru
      _
    // Predicated region
    $region14: #{tpu_custom_call.1} parent=1 // pred_check
      _
    $region15: #{tpu_custom_call.1} parent=1 // pred_check_branch
      %38 = sbr.rel (0) target = $region17
    $region16: #{tpu_custom_call.1} parent=1 // pred_region
      %s40 = ssub.s32 6144, 6144
      %41 = vsyncadd [#allocation6], %s40
      %s42 = sshll.u32 [#allocation7], 4
      %s43 = int_to_ptr.vmem [resolvable:$true] %s42
      %48 = dma.hbm_to_vmem [thread:$0]  %s3, 6144, %s43, [#allocation6], 128, 128, 8
    $region17: #{tpu_custom_call.1} parent=1 // pred_fallthru
      _
    // Predicated region
    $region18: #{tpu_custom_call.1} parent=1 // pred_check
      _
    $region19: #{tpu_custom_call.1} parent=1 // pred_check_branch
      %50 = sbr.rel (0) target = $region21
    $region20: #{tpu_custom_call.1} parent=1 // pred_region
      _
    $region21: #{tpu_custom_call.1} parent=1 // pred_fallthru
      _
    // Predicated region
    $region22: #{tpu_custom_call.1} parent=1 // pred_check
      _
    $region23: #{tpu_custom_call.1} parent=1 // pred_check_branch
      %52 = sbr.rel (0) target = $region25
    $region24: #{tpu_custom_call.1} parent=1 // pred_region
      %53 = dma.done [#allocation3], 128
    $region25: #{tpu_custom_call.1} parent=1 // pred_fallthru
      _
    // Predicated region
    $region26: #{tpu_custom_call.1} parent=1 // pred_check
      _
    $region27: #{tpu_custom_call.1} parent=1 // pred_check_branch
      %55 = sbr.rel (0) target = $region29
    $region28: #{tpu_custom_call.1} parent=1 // pred_region
      %56 = dma.done [#allocation6], 768
    $region29: #{tpu_custom_call.1} parent=1 // pred_fallthru
      _
    // Predicated region
    $region30: #{tpu_custom_call.1} parent=1 // pred_check
      _
    $region31: #{tpu_custom_call.1} parent=1 // pred_check_branch
      %58 = sbr.rel (0) target = $region33
    $region32: #{tpu_custom_call.1} parent=1 // pred_region
      %59 = dma.done [#allocation6], 6144
    $region33: #{tpu_custom_call.1} parent=1 // pred_fallthru
      _
    %v60 = vld [vmem:[#allocation2] sm:$0xff]
    %v61 = vld [vmem:[#allocation5] sm:$0xff]
    %v62 = vld [vmem:[#allocation5 + $0x8] sm:$0xff]
    %v63 = vld [vmem:[#allocation5 + $0x10] sm:$0xff]
    %v64 = vld [vmem:[#allocation5 + $0x18] sm:$0xff]
    %v65 = vld [vmem:[#allocation5 + $0x20] sm:$0xff]
    %v66 = vld [vmem:[#allocation5 + $0x28] sm:$0xff]
    %v67 = vld [vmem:[%s2] sm:$0x7]
    %v69 = vlaneseq
    %v70 = vshrl.u32 %v69, 7
    %v71 = vsub.s32 0, %v70
    %v72 = vrot.slane %v67, %v71
    %v73 = vlaneseq
    %v74 = vshrl.u32 %v73, 7
    %v75 = vsub.s32 1, %v74
    %v76 = vrot.slane %v67, %v75
    %v77 = vlaneseq
    %v78 = vshrl.u32 %v77, 7
    %v79 = vsub.s32 2, %v78
    %v80 = vrot.slane %v67, %v79
    %vm84 = vcmask 130048
    %v86 = vsel %vm84, %v60, 0
    %88 = vmatprep.subr.mxu0 0.0
    %89 = vmatpush1.msra.mxu0 0.0
    %90 = vmatprep.subr.mxu0 0.0
    %91 = vmatpush1.msra.mxu0 0.0
    %92 = vmatprep.subr.mxu0 0.0
    %93 = vmatpush1.msra.mxu0 0.0
    %94 = vmatprep.subr.mxu0 0.0
    %95 = vmatpush1.msra.mxu0 0.0
    %96 = vmatprep.subr.mxu0 0.0
    %97 = vmatpush1.msra.mxu0 0.0
    %98 = vmatprep.subr.mxu0 0.0
    %99 = vmatpush1.msra.mxu0 0.0
    %100 = vmatprep.subr.mxu0 0.0
    %101 = vmatpush1.msra.mxu0 0.0
    %102 = vmatprep.subr.mxu0 0.0
    %103 = vmatpush1.msra.mxu0 0.0
    %104 = vmatprep.subr.mxu0 0.0
    %105 = vmatpush1.msra.mxu0 0.0
    %106 = vmatprep.subr.mxu0 0.0
    %107 = vmatpush1.msra.mxu0 0.0
    %108 = vmatprep.subr.mxu0 0.0
    %109 = vmatpush1.msra.mxu0 0.0
    %110 = vmatprep.subr.mxu0 0.0
    %111 = vmatpush1.msra.mxu0 0.0
    %112 = vmatprep.subr.mxu0 0.0
    %113 = vmatpush1.msra.mxu0 0.0
    %114 = vmatprep.subr.mxu0 0.0
    %115 = vmatpush1.msra.mxu0 0.0
    %116 = vmatprep.subr.mxu0 %v65
    %117 = vmatpush1.msra.mxu0 %v64
    %118 = vmatprep.subr.mxu0 %v62
    %119 = vmatpush1.msra.mxu0 %v61
    %120 = vmatprep.subr.mxu0 0.0
    %121 = vmatpush2.msra.mxu0 0.0
    %122 = vmatprep.subr.mxu0 0.0
    %123 = vmatpush2.msra.mxu0 0.0
    %124 = vmatprep.subr.mxu0 0.0
    %125 = vmatpush2.msra.mxu0 0.0
    %126 = vmatprep.subr.mxu0 0.0
    %127 = vmatpush2.msra.mxu0 0.0
    %128 = vmatprep.subr.mxu0 0.0
    %129 = vmatpush2.msra.mxu0 0.0
    %130 = vmatprep.subr.mxu0 0.0
    %131 = vmatpush2.msra.mxu0 0.0
    %132 = vmatprep.subr.mxu0 0.0
    %133 = vmatpush2.msra.mxu0 0.0
    %134 = vmatprep.subr.mxu0 0.0
    %135 = vmatpush2.msra.mxu0 0.0
    %136 = vmatprep.subr.mxu0 0.0
    %137 = vmatpush2.msra.mxu0 0.0
    %138 = vmatprep.subr.mxu0 0.0
    %139 = vmatpush2.msra.mxu0 0.0
    %140 = vmatprep.subr.mxu0 0.0
    %141 = vmatpush2.msra.mxu0 0.0
    %142 = vmatprep.subr.mxu0 0.0
    %143 = vmatpush2.msra.mxu0 0.0
    %144 = vmatprep.subr.mxu0 0.0
    %145 = vmatpush2.msra.mxu0 0.0
    %146 = vmatprep.subr.mxu0 0.0
    %147 = vmatpush2.msra.mxu0 0.0
    %148 = vmatprep.subr.mxu0 0.0
    %149 = vmatpush2.msra.mxu0 0.0
    %150 = vmatprep.subr.mxu0 0.0
    %151 = vmatpush2.msra.mxu0 0.0
    %152 = vmatprep.mubr.f32.mxu0 0.0
    %153 = vmatmul.mubr.f32.gmra.mxu0 %v86
    %v154 = vpop.f32.mrf.mxu0
    %v155 = vadd.f32 %v72, %v154
    %v156 = vpop.f32.mrf.mxu0
    %v157 = vadd.f32 %v76, %v156
    %158 = vdwg.mxu0
    %159 = vmatprep.subr.mxu0 0.0
    %160 = vmatpush1.msra.mxu0 0.0
    %161 = vmatprep.subr.mxu0 0.0
    %162 = vmatpush1.msra.mxu0 0.0
    %163 = vmatprep.subr.mxu0 0.0
    %164 = vmatpush1.msra.mxu0 0.0
    %165 = vmatprep.subr.mxu0 0.0
    %166 = vmatpush1.msra.mxu0 0.0
    %167 = vmatprep.subr.mxu0 0.0
    %168 = vmatpush1.msra.mxu0 0.0
    %169 = vmatprep.subr.mxu0 0.0
    %170 = vmatpush1.msra.mxu0 0.0
    %171 = vmatprep.subr.mxu0 0.0
    %172 = vmatpush1.msra.mxu0 0.0
    %173 = vmatprep.subr.mxu0 0.0
    %174 = vmatpush1.msra.mxu0 0.0
    %175 = vmatprep.subr.mxu0 0.0
    %176 = vmatpush1.msra.mxu0 0.0
    %177 = vmatprep.subr.mxu0 0.0
    %178 = vmatpush1.msra.mxu0 0.0
    %179 = vmatprep.subr.mxu0 0.0
    %180 = vmatpush1.msra.mxu0 0.0
    %181 = vmatprep.subr.mxu0 0.0
    %182 = vmatpush1.msra.mxu0 0.0
    %183 = vmatprep.subr.mxu0 0.0
    %184 = vmatpush1.msra.mxu0 0.0
    %185 = vmatprep.subr.mxu0 0.0
    %186 = vmatpush1.msra.mxu0 0.0
    %187 = vmatprep.subr.mxu0 0.0
    %188 = vmatpush1.msra.mxu0 %v66
    %189 = vmatprep.subr.mxu0 0.0
    %190 = vmatpush1.msra.mxu0 %v63
    %191 = vmatprep.subr.mxu0 0.0
    %192 = vmatpush2.msra.mxu0 0.0
    %193 = vmatprep.subr.mxu0 0.0
    %194 = vmatpush2.msra.mxu0 0.0
    %195 = vmatprep.subr.mxu0 0.0
    %196 = vmatpush2.msra.mxu0 0.0
    %197 = vmatprep.subr.mxu0 0.0
    %198 = vmatpush2.msra.mxu0 0.0
    %199 = vmatprep.subr.mxu0 0.0
    %200 = vmatpush2.msra.mxu0 0.0
    %201 = vmatprep.subr.mxu0 0.0
    %202 = vmatpush2.msra.mxu0 0.0
    %203 = vmatprep.subr.mxu0 0.0
    %204 = vmatpush2.msra.mxu0 0.0
    %205 = vmatprep.subr.mxu0 0.0
    %206 = vmatpush2.msra.mxu0 0.0
    %207 = vmatprep.subr.mxu0 0.0
    %208 = vmatpush2.msra.mxu0 0.0
    %209 = vmatprep.subr.mxu0 0.0
    %210 = vmatpush2.msra.mxu0 0.0
    %211 = vmatprep.subr.mxu0 0.0
    %212 = vmatpush2.msra.mxu0 0.0
    %213 = vmatprep.subr.mxu0 0.0
    %214 = vmatpush2.msra.mxu0 0.0
    %215 = vmatprep.subr.mxu0 0.0
    %216 = vmatpush2.msra.mxu0 0.0
    %217 = vmatprep.subr.mxu0 0.0
    %218 = vmatpush2.msra.mxu0 0.0
    %219 = vmatprep.subr.mxu0 0.0
    %220 = vmatpush2.msra.mxu0 0.0
    %221 = vmatprep.subr.mxu0 0.0
    %222 = vmatpush2.msra.mxu0 0.0
    %223 = vmatprep.mubr.f32.mxu0 0.0
    %224 = vmatmul.mubr.f32.gmra.mxu0 %v86
    %v225 = vpop.f32.mrf.mxu0
    %v226 = vadd.f32 %v80, %v225
    %v227 = vpop.f32.mrf.mxu0
    %228 = vdwg.mxu0
    %v229 = vmax.f32 %v155, 0.0
    %v230 = vmax.f32 %v157, 0.0
    %v231 = vmax.f32 %v226, 0.0
    %v232 = vmin.f32 %v229, 6.0
    %v233 = vmin.f32 %v230, 6.0
    %v234 = vmin.f32 %v231, 6.0
    %v235 = vld [vmem:[#allocation7] sm:$0xff]
    %v236 = vld [vmem:[#allocation7 + $0x8] sm:$0xff]
    %v237 = vld [vmem:[#allocation7 + $0x10] sm:$0xff]
    %v238 = vld [vmem:[#allocation7 + $0x18] sm:$0xff]
    %v239 = vld [vmem:[#allocation7 + $0x20] sm:$0xff]
    %v240 = vld [vmem:[#allocation7 + $0x28] sm:$0xff]
    %v241 = vld [vmem:[#allocation7 + $0x30] sm:$0xff]
    %v242 = vld [vmem:[#allocation7 + $0x38] sm:$0xff]
    %v243 = vld [vmem:[#allocation7 + $0x40] sm:$0xff]
    %v244 = vld [vmem:[#allocation7 + $0x48] sm:$0xff]
    %v245 = vld [vmem:[#allocation7 + $0x50] sm:$0xff]
    %v246 = vld [vmem:[#allocation7 + $0x58] sm:$0xff]
    %v247 = vld [vmem:[#allocation7 + $0x60] sm:$0xff]
    %v248 = vld [vmem:[#allocation7 + $0x68] sm:$0xff]
    %v249 = vld [vmem:[#allocation7 + $0x70] sm:$0xff]
    %v250 = vld [vmem:[#allocation7 + $0x78] sm:$0xff]
    %v251 = vld [vmem:[#allocation7 + $0x80] sm:$0xff]
    %v252 = vld [vmem:[#allocation7 + $0x88] sm:$0xff]
    %v253 = vld [vmem:[#allocation7 + $0x90] sm:$0xff]
    %v254 = vld [vmem:[#allocation7 + $0x98] sm:$0xff]
    %v255 = vld [vmem:[#allocation7 + $0xa0] sm:$0xff]
    %v256 = vld [vmem:[#allocation7 + $0xa8] sm:$0xff]
    %v257 = vld [vmem:[#allocation7 + $0xb0] sm:$0xff]
    %v258 = vld [vmem:[#allocation7 + $0xb8] sm:$0xff]
    %v259 = vld [vmem:[#allocation7 + $0xc0] sm:$0xff]
    %v260 = vld [vmem:[#allocation7 + $0xc8] sm:$0xff]
    %v261 = vld [vmem:[#allocation7 + $0xd0] sm:$0xff]
    %v262 = vld [vmem:[#allocation7 + $0xd8] sm:$0xff]
    %v263 = vld [vmem:[#allocation7 + $0xe0] sm:$0xff]
    %v264 = vld [vmem:[#allocation7 + $0xe8] sm:$0xff]
    %v265 = vld [vmem:[#allocation7 + $0xf0] sm:$0xff]
    %v266 = vld [vmem:[#allocation7 + $0xf8] sm:$0xff]
    %v267 = vld [vmem:[#allocation7 + $0x100] sm:$0xff]
    %v268 = vld [vmem:[#allocation7 + $0x108] sm:$0xff]
    %v269 = vld [vmem:[#allocation7 + $0x110] sm:$0xff]
    %v270 = vld [vmem:[#allocation7 + $0x118] sm:$0xff]
    %v271 = vld [vmem:[#allocation7 + $0x120] sm:$0xff]
    %v272 = vld [vmem:[#allocation7 + $0x128] sm:$0xff]
    %v273 = vld [vmem:[#allocation7 + $0x130] sm:$0xff]
    %v274 = vld [vmem:[#allocation7 + $0x138] sm:$0xff]
    %v275 = vld [vmem:[#allocation7 + $0x140] sm:$0xff]
    %v276 = vld [vmem:[#allocation7 + $0x148] sm:$0xff]
    %v277 = vld [vmem:[#allocation7 + $0x150] sm:$0xff]
    %v278 = vld [vmem:[#allocation7 + $0x158] sm:$0xff]
    %v279 = vld [vmem:[#allocation7 + $0x160] sm:$0xff]
    %v280 = vld [vmem:[#allocation7 + $0x168] sm:$0xff]
    %v281 = vld [vmem:[#allocation7 + $0x170] sm:$0xff]
    %v282 = vld [vmem:[#allocation7 + $0x178] sm:$0xff]
    %v283 = vld [vmem:[%s4] sm:$0x1]
    %v285 = vlaneseq
    %v286 = vshrl.u32 %v285, 7
    %v287 = vsub.s32 0, %v286
    %v288 = vrot.slane %v283, %v287
    %290 = vmatprep.subr.mxu0 0.0
    %291 = vmatpush1.msra.mxu0 %v250
    %292 = vmatprep.subr.mxu0 0.0
    %293 = vmatpush1.msra.mxu0 %v249
    %294 = vmatprep.subr.mxu0 0.0
    %295 = vmatpush1.msra.mxu0 %v248
    %296 = vmatprep.subr.mxu0 0.0
    %297 = vmatpush1.msra.mxu0 %v247
    %298 = vmatprep.subr.mxu0 0.0
    %299 = vmatpush1.msra.mxu0 %v246
    %300 = vmatprep.subr.mxu0 0.0
    %301 = vmatpush1.msra.mxu0 %v245
    %302 = vmatprep.subr.mxu0 0.0
    %303 = vmatpush1.msra.mxu0 %v244
    %304 = vmatprep.subr.mxu0 0.0
    %305 = vmatpush1.msra.mxu0 %v243
    %306 = vmatprep.subr.mxu0 0.0
    %307 = vmatpush1.msra.mxu0 %v242
    %308 = vmatprep.subr.mxu0 0.0
    %309 = vmatpush1.msra.mxu0 %v241
    %310 = vmatprep.subr.mxu0 0.0
    %311 = vmatpush1.msra.mxu0 %v240
    %312 = vmatprep.subr.mxu0 0.0
    %313 = vmatpush1.msra.mxu0 %v239
    %314 = vmatprep.subr.mxu0 0.0
    %315 = vmatpush1.msra.mxu0 %v238
    %316 = vmatprep.subr.mxu0 0.0
    %317 = vmatpush1.msra.mxu0 %v237
    %318 = vmatprep.subr.mxu0 0.0
    %319 = vmatpush1.msra.mxu0 %v236
    %320 = vmatprep.subr.mxu0 0.0
    %321 = vmatpush1.msra.mxu0 %v235
    %322 = vmatprep.subr.mxu0 0.0
    %323 = vmatpush2.msra.mxu0 %v266
    %324 = vmatprep.subr.mxu0 0.0
    %325 = vmatpush2.msra.mxu0 %v265
    %326 = vmatprep.subr.mxu0 0.0
    %327 = vmatpush2.msra.mxu0 %v264
    %328 = vmatprep.subr.mxu0 0.0
    %329 = vmatpush2.msra.mxu0 %v263
    %330 = vmatprep.subr.mxu0 0.0
    %331 = vmatpush2.msra.mxu0 %v262
    %332 = vmatprep.subr.mxu0 0.0
    %333 = vmatpush2.msra.mxu0 %v261
    %334 = vmatprep.subr.mxu0 0.0
    %335 = vmatpush2.msra.mxu0 %v260
    %336 = vmatprep.subr.mxu0 0.0
    %337 = vmatpush2.msra.mxu0 %v259
    %338 = vmatprep.subr.mxu0 0.0
    %339 = vmatpush2.msra.mxu0 %v258
    %340 = vmatprep.subr.mxu0 0.0
    %341 = vmatpush2.msra.mxu0 %v257
    %342 = vmatprep.subr.mxu0 0.0
    %343 = vmatpush2.msra.mxu0 %v256
    %344 = vmatprep.subr.mxu0 0.0
    %345 = vmatpush2.msra.mxu0 %v255
    %346 = vmatprep.subr.mxu0 0.0
    %347 = vmatpush2.msra.mxu0 %v254
    %348 = vmatprep.subr.mxu0 0.0
    %349 = vmatpush2.msra.mxu0 %v253
    %350 = vmatprep.subr.mxu0 0.0
    %351 = vmatpush2.msra.mxu0 %v252
    %352 = vmatprep.subr.mxu0 0.0
    %353 = vmatpush2.msra.mxu0 %v251
    %354 = vmatprep.mubr.f32.mxu0 %v233
    %355 = vmatmul.mubr.f32.gmra.mxu0 %v232
    %v356 = vpop.f32.mrf.mxu0
    %v357 = vadd.f32 %v288, %v356
    %v358 = vpop.f32.mrf.mxu0
    %359 = vdwg.mxu0
    %360 = vmatprep.subr.mxu0 0.0
    %361 = vmatpush1.msra.mxu0 %v282
    %362 = vmatprep.subr.mxu0 0.0
    %363 = vmatpush1.msra.mxu0 %v281
    %364 = vmatprep.subr.mxu0 0.0
    %365 = vmatpush1.msra.mxu0 %v280
    %366 = vmatprep.subr.mxu0 0.0
    %367 = vmatpush1.msra.mxu0 %v279
    %368 = vmatprep.subr.mxu0 0.0
    %369 = vmatpush1.msra.mxu0 %v278
    %370 = vmatprep.subr.mxu0 0.0
    %371 = vmatpush1.msra.mxu0 %v277
    %372 = vmatprep.subr.mxu0 0.0
    %373 = vmatpush1.msra.mxu0 %v276
    %374 = vmatprep.subr.mxu0 0.0
    %375 = vmatpush1.msra.mxu0 %v275
    %376 = vmatprep.subr.mxu0 0.0
    %377 = vmatpush1.msra.mxu0 %v274
    %378 = vmatprep.subr.mxu0 0.0
    %379 = vmatpush1.msra.mxu0 %v273
    %380 = vmatprep.subr.mxu0 0.0
    %381 = vmatpush1.msra.mxu0 %v272
    %382 = vmatprep.subr.mxu0 0.0
    %383 = vmatpush1.msra.mxu0 %v271
    %384 = vmatprep.subr.mxu0 0.0
    %385 = vmatpush1.msra.mxu0 %v270
    %386 = vmatprep.subr.mxu0 0.0
    %387 = vmatpush1.msra.mxu0 %v269
    %388 = vmatprep.subr.mxu0 0.0
    %389 = vmatpush1.msra.mxu0 %v268
    %390 = vmatprep.subr.mxu0 0.0
    %391 = vmatpush1.msra.mxu0 %v267
    %392 = vmatprep.subr.mxu0 0.0
    %393 = vmatpush2.msra.mxu0 0.0
    %394 = vmatprep.subr.mxu0 0.0
    %395 = vmatpush2.msra.mxu0 0.0
    %396 = vmatprep.subr.mxu0 0.0
    %397 = vmatpush2.msra.mxu0 0.0
    %398 = vmatprep.subr.mxu0 0.0
    %399 = vmatpush2.msra.mxu0 0.0
    %400 = vmatprep.subr.mxu0 0.0
    %401 = vmatpush2.msra.mxu0 0.0
    %402 = vmatprep.subr.mxu0 0.0
    %403 = vmatpush2.msra.mxu0 0.0
    %404 = vmatprep.subr.mxu0 0.0
    %405 = vmatpush2.msra.mxu0 0.0
    %406 = vmatprep.subr.mxu0 0.0
    %407 = vmatpush2.msra.mxu0 0.0
    %408 = vmatprep.subr.mxu0 0.0
    %409 = vmatpush2.msra.mxu0 0.0
    %410 = vmatprep.subr.mxu0 0.0
    %411 = vmatpush2.msra.mxu0 0.0
    %412 = vmatprep.subr.mxu0 0.0
    %413 = vmatpush2.msra.mxu0 0.0
    %414 = vmatprep.subr.mxu0 0.0
    %415 = vmatpush2.msra.mxu0 0.0
    %416 = vmatprep.subr.mxu0 0.0
    %417 = vmatpush2.msra.mxu0 0.0
    %418 = vmatprep.subr.mxu0 0.0
    %419 = vmatpush2.msra.mxu0 0.0
    %420 = vmatprep.subr.mxu0 0.0
    %421 = vmatpush2.msra.mxu0 0.0
    %422 = vmatprep.subr.mxu0 0.0
    %423 = vmatpush2.msra.mxu0 0.0
    %424 = vmatprep.mubr.f32.mxu0 0.0
    %425 = vmatmul.mubr.f32.gmra.mxu0 %v234
    %v426 = vpop.f32.mrf.mxu0
    %v427 = vadd.f32 %v357, %v426
    %v428 = vpop.f32.mrf.mxu0
    %429 = vdwg.mxu0
    %v430 = vtanh.pop %v427
    %v431 = vmul.f32 %v430, 2.0
    %v432 = vmax.f32 %v427, 0.0
    %v433 = vand.u32 2147483647, %v427
    %v434 = vsub.f32 0.0, %v433
    %v435 = vmul.f32 %v434, 1.442695
    %v436 = vpow.pop %v435
    %v437 = vadd.f32 %v436, 1.0
    %v438 = vlog2.pop %v437
    %v439 = vmul.f32 %v438, 0.6931472
    %v440 = vmul.f32 -0.5, %v436
    %v441 = vadd.f32 %v440, 1.0
    %v442 = vmul.f32 %v441, %v436
    %v443 = vand.u32 2147483647, %v436
    %vm444 = vcmp.lt.f32.partialorder %v443, 0.0004427343
    %v445 = vsel %vm444, %v442, %v439
    %v446 = vadd.f32 %v432, %v445
    %v447 = vadd.f32 %v446, 0.001
    %v448 = vlaneseq
    %v449 = vand.u32 %v448, 127
    %vm450 = vcmp.lt.s32.totalorder %v449, 4
    %vm451 = vcmp.lt.s32.totalorder %v449, 8
    %v452 = vsel %vm451, 1, 0
    %vm453 = vcmp.eq.s32.totalorder %v452, 1
    %v454 = vsel %vm453, %v447, %v427
    %v455 = vsel %vm450, 1, 0
    %vm456 = vcmp.eq.s32.totalorder %v455, 1
    %v457 = vsel %vm456, %v431, %v454
    %458 = vst [vmem:[#allocation8] sm:$0xff] %v457
    // Predicated region
    $region34: #{tpu_custom_call.1} parent=1 // pred_check
      _
    $region35: #{tpu_custom_call.1} parent=1 // pred_check_branch
      %460 = sbr.rel (0) target = $region37
    $region36: #{tpu_custom_call.1} parent=1 // pred_region
      %s462 = ssub.s32 128, 128
      %463 = vsyncadd [#allocation4], %s462
      %s465 = sshll.u32 [#allocation8], 4
      %s466 = int_to_ptr.vmem [resolvable:$true] %s465
      %468 = dma.vmem_to_hbm [thread:$0]  %s466, 128, %s5, [#allocation4]
    $region37: #{tpu_custom_call.1} parent=1 // pred_fallthru
      _
    // Predicated region
    $region38: #{tpu_custom_call.1} parent=1 // pred_check
      _
    $region39: #{tpu_custom_call.1} parent=1 // pred_check_branch
      %470 = sbr.rel (0) target = $region41
    $region40: #{tpu_custom_call.1} parent=1 // pred_region
      %471 = dma.done [#allocation4], 128
    $region41: #{tpu_custom_call.1} parent=1 // pred_fallthru
      _
    %472 = vsyncpa [#allocation3], 1
    %473 = vsyncpa [#allocation6], 1
    %474 = vsyncpa [#allocation4], 1

</llo_original>
